<compile_context>
chip_gen: v7x
topology: tpu7x:2x2x1
jax: 0.10.0
libtpu: 0.0.40
codegen_flags: <defaults>
</compile_context>

<pallas_src>
from functools import partial

import jax
import jax.numpy as jnp
from jax.experimental import pallas as pl
from jax.experimental.pallas import tpu as pltpu

HIDDEN = [64, 32, 16]
INPUT_SIZE = 10
OUTPUT_SIZE = 5
_DIMS = [INPUT_SIZE] + HIDDEN + [OUTPUT_SIZE]      # [10, 64, 32, 16, 5]
_N_LAYERS = len(_DIMS) - 1                          # 4
_MAX_DIM = max(_DIMS)                               # 64


def _mlp_kernel(x_ref, wt_ref, b_ref, o_ref):
    # x_ref : (10, TB) f32   batch tile, feature-major (batch on the lane axis)
    # wt_ref: (4, 64, 64) bf16  packed, zero-padded, transposed weights [dout, din]
    # b_ref : (4, 64, 1)  f32   packed, zero-padded biases
    # o_ref : (5, TB) f32
    h = x_ref[...].astype(jnp.bfloat16)             # in-kernel f32->bf16 cast (VPU)
    for li in range(_N_LAYERS):
        # Layer 0 has K=10; layers 1..3 use the full padded 64x64 tile
        # (zero padding keeps the padded rows exactly 0 through bias+ReLU).
        w = wt_ref[li] if li > 0 else wt_ref[0, :, :INPUT_SIZE]
        acc = jnp.dot(w, h, preferred_element_type=jnp.float32)   # MXU, f32 acc
        acc = jnp.maximum(acc + b_ref[li], 0.0)                   # f32 bias + ReLU
        h = acc.astype(jnp.bfloat16) if li < _N_LAYERS - 1 else acc
    o_ref[...] = h[:OUTPUT_SIZE, :].astype(o_ref.dtype)           # lane-dense store


def pack_params(params):
    """Pack (w [din,dout], b [1,dout]) into transposed/zero-padded slabs.
    Call ONCE at init; do not re-pack per forward call."""
    wt = jnp.zeros((_N_LAYERS, _MAX_DIM, _MAX_DIM), jnp.bfloat16)
    bb = jnp.zeros((_N_LAYERS, _MAX_DIM, 1), jnp.float32)
    for li, (w, b) in enumerate(params):
        din, dout = w.shape
        wt = wt.at[li, :dout, :din].set(w.T.astype(jnp.bfloat16))
        bb = bb.at[li, :dout, 0].set(b.reshape(-1).astype(jnp.float32))
    return wt, bb


@partial(jax.jit, static_argnames=("block_rows",))
def feed_forward_nn(x, wt_packed, b_packed, *, block_rows=2048):
    """x: [B, 10] f32; wt_packed/b_packed from pack_params(). Returns [B, 5] f32."""
    B = x.shape[0]
    # Feature-major view for the kernel (batch on the 128-lane axis).  If the
    # caller can provide/consume [features, batch] directly, these two
    # transposes disappear entirely.
    x_fm = x.T                                       # [10, B]

    if B <= block_rows:
        TB = B                                       # single full-array block
    else:
        assert block_rows % 128 == 0, "block_rows must be a multiple of 128"
        TB = block_rows
    grid = (pl.cdiv(B, TB),)                         # ragged last block masked by Pallas

    out_fm = pl.pallas_call(
        _mlp_kernel,
        out_shape=jax.ShapeDtypeStruct((OUTPUT_SIZE, B), jnp.float32),
        grid=grid,
        in_specs=[
            # batch-tiled, lane-dense input: pipelined across the grid
            pl.BlockSpec((INPUT_SIZE, TB), lambda i: (0, i)),
            # packed weights / biases: constant block index -> fetched once,
            # stay resident in VMEM
            pl.BlockSpec((_N_LAYERS, _MAX_DIM, _MAX_DIM), lambda i: (0, 0, 0)),
            pl.BlockSpec((_N_LAYERS, _MAX_DIM, 1), lambda i: (0, 0, 0)),
        ],
        out_specs=pl.BlockSpec((OUTPUT_SIZE, TB), lambda i: (0, i)),
        compiler_params=pltpu.CompilerParams(
            dimension_semantics=("parallel",)),      # v7x: shard tiles over 2 TCs
    )(x_fm, wt_packed, b_packed)
    return out_fm.T                                  # [B, 5]


def init_params(key):
    params = []
    for i in range(_N_LAYERS):
        fan_in, fan_out = _DIMS[i], _DIMS[i + 1]
        key, kw, kb = jax.random.split(key, 3)
        bound = 1.0 / jnp.sqrt(fan_in)               # nn.Linear default init range
        w = jax.random.uniform(kw, (fan_in, fan_out), jnp.float32, -bound, bound)
        b = jax.random.uniform(kb, (1, fan_out), jnp.float32, -bound, bound)
        params.append((w, b))
    return params


def reference(x, params):
    """Matches the kernel's numerics: bf16 inputs/weights, f32 accumulate,
    f32 bias+ReLU, bf16 re-cast of intermediate activations."""
    h = x.astype(jnp.bfloat16).astype(jnp.float32)
    for li, (w, b) in enumerate(params):
        wq = w.astype(jnp.bfloat16).astype(jnp.float32)
        acc = jnp.dot(h, wq, precision=jax.lax.Precision.HIGHEST)
        acc = jnp.maximum(acc + b.reshape(1, -1), 0.0)
        h = acc.astype(jnp.bfloat16).astype(jnp.float32) if li < _N_LAYERS - 1 else acc
    return h


if __name__ == "__main__":
    key = jax.random.PRNGKey(0)
    kx, kp, kx2 = jax.random.split(key, 3)
    params = init_params(kp)
    wt_packed, b_packed = pack_params(params)        # packed ONCE, reused per call

    # Small demo batch (single grid step, block == full array dims).
    B = 8
    x = jax.random.normal(kx, (B, INPUT_SIZE), jnp.float32)
    out = jax.block_until_ready(feed_forward_nn(x, wt_packed, b_packed))
    ref = reference(x, params)
    assert out.shape == (B, OUTPUT_SIZE)
    assert jnp.allclose(out, ref, atol=2e-3, rtol=2e-2), "small-batch mismatch"

    # Multi-step grid with a ragged (masked) last block and resident weights.
    B2 = 300
    x2 = jax.random.normal(kx2, (B2, INPUT_SIZE), jnp.float32)
    out2 = jax.block_until_ready(
        feed_forward_nn(x2, wt_packed, b_packed, block_rows=128))
    ref2 = reference(x2, params)
    assert out2.shape == (B2, OUTPUT_SIZE)
    assert jnp.allclose(out2, ref2, atol=2e-3, rtol=2e-2), "ragged-grid mismatch"

    print("KERNEL_OK")
</pallas_src>

<mosaic_0001>
module attributes {stable_mosaic.version = 11 : i64} {
  func.func @_mlp_kernel(%arg0: i32, %arg1: memref<10x8xf32, #tpu.memory_space<vmem>>, %arg2: memref<4x64x64xbf16, #tpu.memory_space<vmem>>, %arg3: memref<4x64x1xf32, #tpu.memory_space<vmem>>, %arg4: memref<5x8xf32, #tpu.memory_space<vmem>>) attributes {dimension_semantics = [#tpu.dimension_semantics<parallel>], iteration_bounds = array<i64: 1>, scalar_prefetch = 0 : i64, scratch_operands = 0 : i64, tpu.core_type = #tpu.core_type<tc>, window_params = [{transform_indices = @transform_0, window_bounds = array<i64: 10, 8>}, {pipeline_mode = #tpu.pipeline_mode<synchronous>, transform_indices = @transform_1, window_bounds = array<i64: 4, 64, 64>}, {pipeline_mode = #tpu.pipeline_mode<synchronous>, transform_indices = @transform_2, window_bounds = array<i64: 4, 64, 1>}, {transform_indices = @transform_3, window_bounds = array<i64: 5, 8>}]} {
    %c0 = arith.constant 0 : index
    %c0_0 = arith.constant 0 : index
    %0 = vector.load %arg1[%c0, %c0_0] : memref<10x8xf32, #tpu.memory_space<vmem>>, vector<10x8xf32>
    %1 = arith.truncf %0 : vector<10x8xf32> to vector<10x8xbf16>
    %c0_1 = arith.constant 0 : index
    %c0_2 = arith.constant 0 : index
    %c0_3 = arith.constant 0 : index
    %2 = vector.load %arg2[%c0_1, %c0_2, %c0_3] : memref<4x64x64xbf16, #tpu.memory_space<vmem>>, vector<1x64x10xbf16>
    %3 = vector.shape_cast %2 : vector<1x64x10xbf16> to vector<64x10xbf16>
    %cst = arith.constant dense<0.000000e+00> : vector<64x8xf32>
    %4 = tpu.matmul %3, %1, %cst {dimension_numbers = #tpu.dot_dimension_numbers<[1], [0], [0], [1], [0, 0, 1, 1], [], []>} : vector<64x10xbf16>, vector<10x8xbf16>, vector<64x8xf32> -> vector<64x8xf32>
    %c0_4 = arith.constant 0 : index
    %c0_5 = arith.constant 0 : index
    %c0_6 = arith.constant 0 : index
    %5 = vector.load %arg3[%c0_4, %c0_5, %c0_6] : memref<4x64x1xf32, #tpu.memory_space<vmem>>, vector<1x64x1xf32>
    %6 = vector.shape_cast %5 : vector<1x64x1xf32> to vector<64x1xf32>
    %7 = vector.broadcast %6 : vector<64x1xf32> to vector<64x8xf32>
    %8 = arith.addf %4, %7 : vector<64x8xf32>
    %cst_7 = arith.constant 0.000000e+00 : f32
    %9 = vector.broadcast %cst_7 : f32 to vector<64x8xf32>
    %10 = arith.maximumf %8, %9 : vector<64x8xf32>
    %11 = arith.truncf %10 : vector<64x8xf32> to vector<64x8xbf16>
    %c1 = arith.constant 1 : index
    %c0_8 = arith.constant 0 : index
    %c0_9 = arith.constant 0 : index
    %12 = vector.load %arg2[%c1, %c0_8, %c0_9] : memref<4x64x64xbf16, #tpu.memory_space<vmem>>, vector<1x64x64xbf16>
    %13 = vector.shape_cast %12 : vector<1x64x64xbf16> to vector<64x64xbf16>
    %cst_10 = arith.constant dense<0.000000e+00> : vector<64x8xf32>
    %14 = tpu.matmul %13, %11, %cst_10 {dimension_numbers = #tpu.dot_dimension_numbers<[1], [0], [0], [1], [0, 0, 1, 1], [], []>} : vector<64x64xbf16>, vector<64x8xbf16>, vector<64x8xf32> -> vector<64x8xf32>
    %c1_11 = arith.constant 1 : index
    %c0_12 = arith.constant 0 : index
    %c0_13 = arith.constant 0 : index
    %15 = vector.load %arg3[%c1_11, %c0_12, %c0_13] : memref<4x64x1xf32, #tpu.memory_space<vmem>>, vector<1x64x1xf32>
    %16 = vector.shape_cast %15 : vector<1x64x1xf32> to vector<64x1xf32>
    %17 = vector.broadcast %16 : vector<64x1xf32> to vector<64x8xf32>
    %18 = arith.addf %14, %17 : vector<64x8xf32>
    %cst_14 = arith.constant 0.000000e+00 : f32
    %19 = vector.broadcast %cst_14 : f32 to vector<64x8xf32>
    %20 = arith.maximumf %18, %19 : vector<64x8xf32>
    %21 = arith.truncf %20 : vector<64x8xf32> to vector<64x8xbf16>
    %c2 = arith.constant 2 : index
    %c0_15 = arith.constant 0 : index
    %c0_16 = arith.constant 0 : index
    %22 = vector.load %arg2[%c2, %c0_15, %c0_16] : memref<4x64x64xbf16, #tpu.memory_space<vmem>>, vector<1x64x64xbf16>
    %23 = vector.shape_cast %22 : vector<1x64x64xbf16> to vector<64x64xbf16>
    %cst_17 = arith.constant dense<0.000000e+00> : vector<64x8xf32>
    %24 = tpu.matmul %23, %21, %cst_17 {dimension_numbers = #tpu.dot_dimension_numbers<[1], [0], [0], [1], [0, 0, 1, 1], [], []>} : vector<64x64xbf16>, vector<64x8xbf16>, vector<64x8xf32> -> vector<64x8xf32>
    %c2_18 = arith.constant 2 : index
    %c0_19 = arith.constant 0 : index
    %c0_20 = arith.constant 0 : index
    %25 = vector.load %arg3[%c2_18, %c0_19, %c0_20] : memref<4x64x1xf32, #tpu.memory_space<vmem>>, vector<1x64x1xf32>
    %26 = vector.shape_cast %25 : vector<1x64x1xf32> to vector<64x1xf32>
    %27 = vector.broadcast %26 : vector<64x1xf32> to vector<64x8xf32>
    %28 = arith.addf %24, %27 : vector<64x8xf32>
    %cst_21 = arith.constant 0.000000e+00 : f32
    %29 = vector.broadcast %cst_21 : f32 to vector<64x8xf32>
    %30 = arith.maximumf %28, %29 : vector<64x8xf32>
    %31 = arith.truncf %30 : vector<64x8xf32> to vector<64x8xbf16>
    %c3 = arith.constant 3 : index
    %c0_22 = arith.constant 0 : index
    %c0_23 = arith.constant 0 : index
    %32 = vector.load %arg2[%c3, %c0_22, %c0_23] : memref<4x64x64xbf16, #tpu.memory_space<vmem>>, vector<1x64x64xbf16>
    %33 = vector.shape_cast %32 : vector<1x64x64xbf16> to vector<64x64xbf16>
    %cst_24 = arith.constant dense<0.000000e+00> : vector<64x8xf32>
    %34 = tpu.matmul %33, %31, %cst_24 {dimension_numbers = #tpu.dot_dimension_numbers<[1], [0], [0], [1], [0, 0, 1, 1], [], []>} : vector<64x64xbf16>, vector<64x8xbf16>, vector<64x8xf32> -> vector<64x8xf32>
    %c3_25 = arith.constant 3 : index
    %c0_26 = arith.constant 0 : index
    %c0_27 = arith.constant 0 : index
    %35 = vector.load %arg3[%c3_25, %c0_26, %c0_27] : memref<4x64x1xf32, #tpu.memory_space<vmem>>, vector<1x64x1xf32>
    %36 = vector.shape_cast %35 : vector<1x64x1xf32> to vector<64x1xf32>
    %37 = vector.broadcast %36 : vector<64x1xf32> to vector<64x8xf32>
    %38 = arith.addf %34, %37 : vector<64x8xf32>
    %cst_28 = arith.constant 0.000000e+00 : f32
    %39 = vector.broadcast %cst_28 : f32 to vector<64x8xf32>
    %40 = arith.maximumf %38, %39 : vector<64x8xf32>
    %41 = vector.extract_strided_slice %40 {offsets = [0, 0], sizes = [5, 8], strides = [1, 1]} : vector<64x8xf32> to vector<5x8xf32>
    %c0_29 = arith.constant 0 : index
    %c0_30 = arith.constant 0 : index
    %42 = vector.load %arg4[%c0_29, %c0_30] : memref<5x8xf32, #tpu.memory_space<vmem>>, vector<5x8xf32>
    tpu.vector_store %arg4[%c0_29, %c0_30], %41 {strides = array<i32>} : memref<5x8xf32, #tpu.memory_space<vmem>>, vector<5x8xf32>,
    return
  }
  func.func @transform_0(%arg0: i32) -> (i32, i32) {
    %c0_i32 = arith.constant 0 : i32
    %c0_i32_0 = arith.constant 0 : i32
    return %c0_i32, %arg0 : i32, i32
  }
  func.func @transform_1(%arg0: i32) -> (i32, i32, i32) {
    %c0_i32 = arith.constant 0 : i32
    %c0_i32_0 = arith.constant 0 : i32
    %c0_i32_1 = arith.constant 0 : i32
    %c0_i32_2 = arith.constant 0 : i32
    return %c0_i32, %c0_i32_0, %c0_i32_1 : i32, i32, i32
  }
  func.func @transform_2(%arg0: i32) -> (i32, i32, i32) {
    %c0_i32 = arith.constant 0 : i32
    %c0_i32_0 = arith.constant 0 : i32
    %c0_i32_1 = arith.constant 0 : i32
    %c0_i32_2 = arith.constant 0 : i32
    return %c0_i32, %c0_i32_0, %c0_i32_1 : i32, i32, i32
  }
  func.func @transform_3(%arg0: i32) -> (i32, i32) {
    %c0_i32 = arith.constant 0 : i32
    %c0_i32_0 = arith.constant 0 : i32
    return %c0_i32, %arg0 : i32, i32
  }
}

</mosaic_0001>

<llo_original>
// kernel: feed_forward_nn.1
$region0: #{feed_forward_nn.1}
  #allocation0 [shape = 'u32[]', space=smem, size = 0x4, offset = 0x4, fixed_abs, tag = 'smem constant byte address 0x4 - core index']
  #allocation1 [shape = 'u32[144,128]{1,0:T(1,128)}', space=vmem, size = 0x12000, scoped, tag = 'internal scratch']
  %s0 = inlined_call_operand.vmem [shape: f32[10,8], index: 0, kind: input, shape index: {}]
  %s1 = inlined_call_operand.vmem [shape: bf16[4,64,64], index: 1, kind: input, shape index: {}]
  %s2 = inlined_call_operand.vmem [shape: f32[4,64,1], index: 2, kind: input, shape index: {}]
  %s3 = inlined_call_operand.vmem [shape: f32[5,8], index: 3, kind: output, shape index: {}]
  %s4 = sld [smem:[#allocation0]]
  $region22: #{feed_forward_nn.1} parent=0
    _
  %s6 = ssub.s32 1, %s4
  %s7 = scalar_select 0, %s6, %s4
  // Predicated region
  $region2: #{feed_forward_nn.1} parent=0 // pred_check
    _
  $region3: #{feed_forward_nn.1} parent=0 // pred_check_branch
    %9 = sbr.rel (0) target = $region5
  $region4: #{feed_forward_nn.1} parent=0 // pred_region
    _
  $region5: #{feed_forward_nn.1} parent=0 // pred_fallthru
    _
  // Predicated region
  $region6: #{feed_forward_nn.1} parent=0 // pred_check
    _
  $region7: #{feed_forward_nn.1} parent=0 // pred_check_branch
    %11 = sbr.rel (0) target = $region9
  $region8: #{feed_forward_nn.1} parent=0 // pred_region
    _
  $region9: #{feed_forward_nn.1} parent=0 // pred_fallthru
    _
  // Predicated region
  $region10: #{feed_forward_nn.1} parent=0 // pred_check
    _
  $region11: #{feed_forward_nn.1} parent=0 // pred_check_branch
    %13 = sbr.rel (0) target = $region13
  $region12: #{feed_forward_nn.1} parent=0 // pred_region
    _
  $region13: #{feed_forward_nn.1} parent=0 // pred_fallthru
    _
  %v15 = vld [vmem:[%s0] sm:$0xff]
  %v16 = vld [vmem:[%s0 + $0x8] sm:$0x3]
  %v17 = vpack.c.bf16 %v16, %v15
  %v18 = vld [vmem:[%s1] sm:$0xf]
  %v19 = vld [vmem:[%s1 + $0x4] sm:$0xf]
  %v20 = vld [vmem:[%s1 + $0x8] sm:$0xf]
  %v21 = vld [vmem:[%s1 + $0xc] sm:$0xf]
  %v22 = vld [vmem:[%s1 + $0x10] sm:$0xf]
  %v23 = vld [vmem:[%s1 + $0x14] sm:$0xf]
  %v24 = vld [vmem:[%s1 + $0x18] sm:$0xf]
  %v25 = vld [vmem:[%s1 + $0x1c] sm:$0xf]
  %v26 = vld [vmem:[%s2] sm:$0xff]
  %v27 = vld [vmem:[%s2 + $0x8] sm:$0xff]
  %v28 = vld [vmem:[%s2 + $0x10] sm:$0xff]
  %v29 = vld [vmem:[%s2 + $0x18] sm:$0xff]
  %v30 = vld [vmem:[%s2 + $0x20] sm:$0xff]
  %v31 = vld [vmem:[%s2 + $0x28] sm:$0xff]
  %v32 = vld [vmem:[%s2 + $0x30] sm:$0xff]
  %v33 = vld [vmem:[%s2 + $0x38] sm:$0xff]
  %35 = vset.pattern.permute.xlu0 0
  %36 = vperm.xlu0 %35, %v26
  %v37 = vpop.permute.xlu0 %36
  %40 = vset.pattern.permute.xlu0 0
  %41 = vperm.xlu0 %40, %v27
  %v42 = vpop.permute.xlu0 %41
  %45 = vset.pattern.permute.xlu0 0
  %46 = vperm.xlu0 %45, %v28
  %v47 = vpop.permute.xlu0 %46
  %50 = vset.pattern.permute.xlu0 0
  %51 = vperm.xlu0 %50, %v29
  %v52 = vpop.permute.xlu0 %51
  %55 = vset.pattern.permute.xlu0 0
  %56 = vperm.xlu0 %55, %v30
  %v57 = vpop.permute.xlu0 %56
  %60 = vset.pattern.permute.xlu0 0
  %61 = vperm.xlu0 %60, %v31
  %v62 = vpop.permute.xlu0 %61
  %65 = vset.pattern.permute.xlu0 0
  %66 = vperm.xlu0 %65, %v32
  %v67 = vpop.permute.xlu0 %66
  %70 = vset.pattern.permute.xlu0 0
  %71 = vperm.xlu0 %70, %v33
  %v72 = vpop.permute.xlu0 %71
  %v82 = vunpack.c.l.b16 %v18
  %v83 = vunpack.c.l.b16 %v19
  %v84 = vunpack.c.l.b16 %v20
  %v85 = vunpack.c.l.b16 %v21
  %v86 = vunpack.c.l.b16 %v22
  %v87 = vunpack.c.l.b16 %v23
  %v88 = vunpack.c.l.b16 %v24
  %v89 = vunpack.c.l.b16 %v25
  %v90 = vpack.c.b16 %v83, %v82
  %v91 = vpack.c.b16 %v85, %v84
  %v92 = vpack.c.b16 %v87, %v86
  %v93 = vpack.c.b16 %v89, %v88
  %vm94 = vcmask 80896
  %v96 = vsel %vm94, %v90, 0
  %v99 = vsel %vm94, %v91, 0
  %v102 = vsel %vm94, %v92, 0
  %v105 = vsel %vm94, %v93, 0
  %vm107 = vcmask 1044480
  %v109 = vsel %vm107, %v17, 0
  %111 = vmatprep.subr.bf16.mxu0 0
  %112 = vmatpush1.bf16.msra.mxu0 %v109
  %113 = vmatprep.subr.bf16.mxu0 0
  %114 = vmatpush1.bf16.msra.mxu0 0
  %115 = vmatprep.subr.bf16.mxu0 0
  %116 = vmatpush1.bf16.msra.mxu0 0
  %117 = vmatprep.subr.bf16.mxu0 0
  %118 = vmatpush1.bf16.msra.mxu0 0
  %119 = vmatprep.subr.bf16.mxu0 0
  %120 = vmatpush1.bf16.msra.mxu0 0
  %121 = vmatprep.subr.bf16.mxu0 0
  %122 = vmatpush1.bf16.msra.mxu0 0
  %123 = vmatprep.subr.bf16.mxu0 0
  %124 = vmatpush1.bf16.msra.mxu0 0
  %125 = vmatprep.subr.bf16.mxu0 0
  %126 = vmatpush1.bf16.msra.mxu0 0
  %127 = vmatprep.subr.bf16.mxu0 0
  %128 = vmatpush1.bf16.msra.mxu0 0
  %129 = vmatprep.subr.bf16.mxu0 0
  %130 = vmatpush1.bf16.msra.mxu0 0
  %131 = vmatprep.subr.bf16.mxu0 0
  %132 = vmatpush1.bf16.msra.mxu0 0
  %133 = vmatprep.subr.bf16.mxu0 0
  %134 = vmatpush1.bf16.msra.mxu0 0
  %135 = vmatprep.subr.bf16.mxu0 0
  %136 = vmatpush1.bf16.msra.mxu0 0
  %137 = vmatprep.subr.bf16.mxu0 0
  %138 = vmatpush1.bf16.msra.mxu0 0
  %139 = vmatprep.subr.bf16.mxu0 0
  %140 = vmatpush1.bf16.msra.mxu0 0
  %141 = vmatprep.subr.bf16.mxu0 0
  %142 = vmatpush1.bf16.msra.mxu0 0
  %143 = vmatprep.mubr.bf16.mxu0 0
  %144 = vmatmul.mubr.bf16.gmra.mrb[0].mxu0 %v96
  %v145 = vpop.f32.mrb[0].mxu0
  %v146 = vadd.f32 %v37, %v145
  %v147 = vpop.f32.mrb[0].mxu0
  %v148 = vpop.f32.mrb[0].mxu0
  %v149 = vadd.f32 %v42, %v148
  %v150 = vpop.f32.mrb[0].mxu0
  %151 = vmatprep.mubr.bf16.mxu0 0
  %152 = vmatmul.mubr.bf16.gmra.mrb[0].mxu0 %v99
  %v153 = vpop.f32.mrb[0].mxu0
  %v154 = vadd.f32 %v47, %v153
  %v155 = vpop.f32.mrb[0].mxu0
  %v156 = vpop.f32.mrb[0].mxu0
  %v157 = vadd.f32 %v52, %v156
  %v158 = vpop.f32.mrb[0].mxu0
  %159 = vmatprep.mubr.bf16.mxu0 0
  %160 = vmatmul.mubr.bf16.gmra.mrb[0].mxu0 %v102
  %v161 = vpop.f32.mrb[0].mxu0
  %v162 = vadd.f32 %v57, %v161
  %v163 = vpop.f32.mrb[0].mxu0
  %v164 = vpop.f32.mrb[0].mxu0
  %v165 = vadd.f32 %v62, %v164
  %v166 = vpop.f32.mrb[0].mxu0
  %167 = vmatprep.mubr.bf16.mxu0 0
  %168 = vmatmul.mubr.bf16.gmra.mrb[0].mxu0 %v105
  %v169 = vpop.f32.mrb[0].mxu0
  %v170 = vadd.f32 %v67, %v169
  %v171 = vpop.f32.mrb[0].mxu0
  %v172 = vpop.f32.mrb[0].mxu0
  %v173 = vadd.f32 %v72, %v172
  %v174 = vpop.f32.mrb[0].mxu0
  %175 = vdwg.mxu0
  %v176 = vmax.f32 %v146, 0.0
  %v177 = vmax.f32 %v149, 0.0
  %v178 = vmax.f32 %v154, 0.0
  %v179 = vmax.f32 %v157, 0.0
  %v180 = vmax.f32 %v162, 0.0
  %v181 = vmax.f32 %v165, 0.0
  %v182 = vmax.f32 %v170, 0.0
  %v183 = vmax.f32 %v173, 0.0
  %v184 = vpack.c.bf16 %v177, %v176
  %v185 = vpack.c.bf16 %v179, %v178
  %v186 = vpack.c.bf16 %v181, %v180
  %v187 = vpack.c.bf16 %v183, %v182
  %s188 = scalar_lea.vmem %s1, 32
  %v189 = vld [vmem:[%s188] sm:$0xf]
  %v190 = vld [vmem:[%s188 + $0x4] sm:$0xf]
  %v191 = vld [vmem:[%s188 + $0x8] sm:$0xf]
  %v192 = vld [vmem:[%s188 + $0xc] sm:$0xf]
  %v193 = vld [vmem:[%s188 + $0x10] sm:$0xf]
  %v194 = vld [vmem:[%s188 + $0x14] sm:$0xf]
  %v195 = vld [vmem:[%s188 + $0x18] sm:$0xf]
  %v196 = vld [vmem:[%s188 + $0x1c] sm:$0xf]
  %s197 = scalar_lea.vmem %s2, 64
  %v198 = vld [vmem:[%s197] sm:$0xff]
  %v199 = vld [vmem:[%s197 + $0x8] sm:$0xff]
  %v200 = vld [vmem:[%s197 + $0x10] sm:$0xff]
  %v201 = vld [vmem:[%s197 + $0x18] sm:$0xff]
  %v202 = vld [vmem:[%s197 + $0x20] sm:$0xff]
  %v203 = vld [vmem:[%s197 + $0x28] sm:$0xff]
  %v204 = vld [vmem:[%s197 + $0x30] sm:$0xff]
  %v205 = vld [vmem:[%s197 + $0x38] sm:$0xff]
  %207 = vset.pattern.permute.xlu0 0
  %208 = vperm.xlu0 %207, %v198
  %v209 = vpop.permute.xlu0 %208
  %212 = vset.pattern.permute.xlu0 0
  %213 = vperm.xlu0 %212, %v199
  %v214 = vpop.permute.xlu0 %213
  %217 = vset.pattern.permute.xlu0 0
  %218 = vperm.xlu0 %217, %v200
  %v219 = vpop.permute.xlu0 %218
  %222 = vset.pattern.permute.xlu0 0
  %223 = vperm.xlu0 %222, %v201
  %v224 = vpop.permute.xlu0 %223
  %227 = vset.pattern.permute.xlu0 0
  %228 = vperm.xlu0 %227, %v202
  %v229 = vpop.permute.xlu0 %228
  %232 = vset.pattern.permute.xlu0 0
  %233 = vperm.xlu0 %232, %v203
  %v234 = vpop.permute.xlu0 %233
  %237 = vset.pattern.permute.xlu0 0
  %238 = vperm.xlu0 %237, %v204
  %v239 = vpop.permute.xlu0 %238
  %242 = vset.pattern.permute.xlu0 0
  %243 = vperm.xlu0 %242, %v205
  %v244 = vpop.permute.xlu0 %243
  %v254 = vunpack.c.l.b16 %v189
  %v255 = vunpack.c.l.b16 %v190
  %v256 = vunpack.c.l.b16 %v191
  %v257 = vunpack.c.l.b16 %v192
  %v258 = vunpack.c.l.b16 %v193
  %v259 = vunpack.c.l.b16 %v194
  %v260 = vunpack.c.l.b16 %v195
  %v261 = vunpack.c.l.b16 %v196
  %v262 = vpack.c.b16 %v255, %v254
  %v263 = vpack.c.b16 %v257, %v256
  %v264 = vpack.c.b16 %v259, %v258
  %v265 = vpack.c.b16 %v261, %v260
  %vm266 = vcmask 523264
  %v268 = vsel %vm266, %v262, 0
  %v271 = vsel %vm266, %v263, 0
  %v274 = vsel %vm266, %v264, 0
  %v277 = vsel %vm266, %v265, 0
  %279 = vmatprep.subr.bf16.mxu0 0
  %280 = vmatpush1.bf16.msra.mxu0 %v184
  %281 = vmatprep.subr.bf16.mxu0 0
  %282 = vmatpush1.bf16.msra.mxu0 %v185
  %283 = vmatprep.subr.bf16.mxu0 0
  %284 = vmatpush1.bf16.msra.mxu0 %v186
  %285 = vmatprep.subr.bf16.mxu0 0
  %286 = vmatpush1.bf16.msra.mxu0 %v187
  %287 = vmatprep.subr.bf16.mxu0 0
  %288 = vmatpush1.bf16.msra.mxu0 0
  %289 = vmatprep.subr.bf16.mxu0 0
  %290 = vmatpush1.bf16.msra.mxu0 0
  %291 = vmatprep.subr.bf16.mxu0 0
  %292 = vmatpush1.bf16.msra.mxu0 0
  %293 = vmatprep.subr.bf16.mxu0 0
  %294 = vmatpush1.bf16.msra.mxu0 0
  %295 = vmatprep.subr.bf16.mxu0 0
  %296 = vmatpush1.bf16.msra.mxu0 0
  %297 = vmatprep.subr.bf16.mxu0 0
  %298 = vmatpush1.bf16.msra.mxu0 0
  %299 = vmatprep.subr.bf16.mxu0 0
  %300 = vmatpush1.bf16.msra.mxu0 0
  %301 = vmatprep.subr.bf16.mxu0 0
  %302 = vmatpush1.bf16.msra.mxu0 0
  %303 = vmatprep.subr.bf16.mxu0 0
  %304 = vmatpush1.bf16.msra.mxu0 0
  %305 = vmatprep.subr.bf16.mxu0 0
  %306 = vmatpush1.bf16.msra.mxu0 0
  %307 = vmatprep.subr.bf16.mxu0 0
  %308 = vmatpush1.bf16.msra.mxu0 0
  %309 = vmatprep.subr.bf16.mxu0 0
  %310 = vmatpush1.bf16.msra.mxu0 0
  %311 = vmatprep.mubr.bf16.mxu0 0
  %312 = vmatmul.mubr.bf16.gmra.mrb[0].mxu0 %v268
  %v313 = vpop.f32.mrb[0].mxu0
  %v314 = vadd.f32 %v209, %v313
  %v315 = vpop.f32.mrb[0].mxu0
  %v316 = vpop.f32.mrb[0].mxu0
  %v317 = vadd.f32 %v214, %v316
  %v318 = vpop.f32.mrb[0].mxu0
  %319 = vmatprep.mubr.bf16.mxu0 0
  %320 = vmatmul.mubr.bf16.gmra.mrb[0].mxu0 %v271
  %v321 = vpop.f32.mrb[0].mxu0
  %v322 = vadd.f32 %v219, %v321
  %v323 = vpop.f32.mrb[0].mxu0
  %v324 = vpop.f32.mrb[0].mxu0
  %v325 = vadd.f32 %v224, %v324
  %v326 = vpop.f32.mrb[0].mxu0
  %327 = vmatprep.mubr.bf16.mxu0 0
  %328 = vmatmul.mubr.bf16.gmra.mrb[0].mxu0 %v274
  %v329 = vpop.f32.mrb[0].mxu0
  %v330 = vadd.f32 %v229, %v329
  %v331 = vpop.f32.mrb[0].mxu0
  %v332 = vpop.f32.mrb[0].mxu0
  %v333 = vadd.f32 %v234, %v332
  %v334 = vpop.f32.mrb[0].mxu0
  %335 = vmatprep.mubr.bf16.mxu0 0
  %336 = vmatmul.mubr.bf16.gmra.mrb[0].mxu0 %v277
  %v337 = vpop.f32.mrb[0].mxu0
  %v338 = vadd.f32 %v239, %v337
  %v339 = vpop.f32.mrb[0].mxu0
  %v340 = vpop.f32.mrb[0].mxu0
  %v341 = vadd.f32 %v244, %v340
  %v342 = vpop.f32.mrb[0].mxu0
  %343 = vdwg.mxu0
  %v344 = vmax.f32 %v314, 0.0
  %v345 = vmax.f32 %v317, 0.0
  %v346 = vmax.f32 %v322, 0.0
  %v347 = vmax.f32 %v325, 0.0
  %v348 = vmax.f32 %v330, 0.0
  %v349 = vmax.f32 %v333, 0.0
  %v350 = vmax.f32 %v338, 0.0
  %v351 = vmax.f32 %v341, 0.0
  %v352 = vpack.c.bf16 %v345, %v344
  %v353 = vpack.c.bf16 %v347, %v346
  %v354 = vpack.c.bf16 %v349, %v348
  %v355 = vpack.c.bf16 %v351, %v350
  %s356 = scalar_lea.vmem %s1, 64
  %v357 = vld [vmem:[%s356] sm:$0xf]
  %v358 = vld [vmem:[%s356 + $0x4] sm:$0xf]
  %v359 = vld [vmem:[%s356 + $0x8] sm:$0xf]
  %v360 = vld [vmem:[%s356 + $0xc] sm:$0xf]
  %v361 = vld [vmem:[%s356 + $0x10] sm:$0xf]
  %v362 = vld [vmem:[%s356 + $0x14] sm:$0xf]
  %v363 = vld [vmem:[%s356 + $0x18] sm:$0xf]
  %v364 = vld [vmem:[%s356 + $0x1c] sm:$0xf]
  %s365 = scalar_lea.vmem %s2, 128
  %v366 = vld [vmem:[%s365] sm:$0xff]
  %v367 = vld [vmem:[%s365 + $0x8] sm:$0xff]
  %v368 = vld [vmem:[%s365 + $0x10] sm:$0xff]
  %v369 = vld [vmem:[%s365 + $0x18] sm:$0xff]
  %v370 = vld [vmem:[%s365 + $0x20] sm:$0xff]
  %v371 = vld [vmem:[%s365 + $0x28] sm:$0xff]
  %v372 = vld [vmem:[%s365 + $0x30] sm:$0xff]
  %v373 = vld [vmem:[%s365 + $0x38] sm:$0xff]
  %375 = vset.pattern.permute.xlu0 0
  %376 = vperm.xlu0 %375, %v366
  %v377 = vpop.permute.xlu0 %376
  %380 = vset.pattern.permute.xlu0 0
  %381 = vperm.xlu0 %380, %v367
  %v382 = vpop.permute.xlu0 %381
  %385 = vset.pattern.permute.xlu0 0
  %386 = vperm.xlu0 %385, %v368
  %v387 = vpop.permute.xlu0 %386
  %390 = vset.pattern.permute.xlu0 0
  %391 = vperm.xlu0 %390, %v369
  %v392 = vpop.permute.xlu0 %391
  %395 = vset.pattern.permute.xlu0 0
  %396 = vperm.xlu0 %395, %v370
  %v397 = vpop.permute.xlu0 %396
  %400 = vset.pattern.permute.xlu0 0
  %401 = vperm.xlu0 %400, %v371
  %v402 = vpop.permute.xlu0 %401
  %405 = vset.pattern.permute.xlu0 0
  %406 = vperm.xlu0 %405, %v372
  %v407 = vpop.permute.xlu0 %406
  %410 = vset.pattern.permute.xlu0 0
  %411 = vperm.xlu0 %410, %v373
  %v412 = vpop.permute.xlu0 %411
  %v422 = vunpack.c.l.b16 %v357
  %v423 = vunpack.c.l.b16 %v358
  %v424 = vunpack.c.l.b16 %v359
  %v425 = vunpack.c.l.b16 %v360
  %v426 = vunpack.c.l.b16 %v361
  %v427 = vunpack.c.l.b16 %v362
  %v428 = vunpack.c.l.b16 %v363
  %v429 = vunpack.c.l.b16 %v364
  %v430 = vpack.c.b16 %v423, %v422
  %v431 = vpack.c.b16 %v425, %v424
  %v432 = vpack.c.b16 %v427, %v426
  %v433 = vpack.c.b16 %v429, %v428
  %v435 = vsel %vm266, %v430, 0
  %v438 = vsel %vm266, %v431, 0
  %v441 = vsel %vm266, %v432, 0
  %v444 = vsel %vm266, %v433, 0
  %446 = vmatprep.subr.bf16.mxu0 0
  %447 = vmatpush1.bf16.msra.mxu0 %v352
  %448 = vmatprep.subr.bf16.mxu0 0
  %449 = vmatpush1.bf16.msra.mxu0 %v353
  %450 = vmatprep.subr.bf16.mxu0 0
  %451 = vmatpush1.bf16.msra.mxu0 %v354
  %452 = vmatprep.subr.bf16.mxu0 0
  %453 = vmatpush1.bf16.msra.mxu0 %v355
  %454 = vmatprep.subr.bf16.mxu0 0
  %455 = vmatpush1.bf16.msra.mxu0 0
  %456 = vmatprep.subr.bf16.mxu0 0
  %457 = vmatpush1.bf16.msra.mxu0 0
  %458 = vmatprep.subr.bf16.mxu0 0
  %459 = vmatpush1.bf16.msra.mxu0 0
  %460 = vmatprep.subr.bf16.mxu0 0
  %461 = vmatpush1.bf16.msra.mxu0 0
  %462 = vmatprep.subr.bf16.mxu0 0
  %463 = vmatpush1.bf16.msra.mxu0 0
  %464 = vmatprep.subr.bf16.mxu0 0
  %465 = vmatpush1.bf16.msra.mxu0 0
  %466 = vmatprep.subr.bf16.mxu0 0
  %467 = vmatpush1.bf16.msra.mxu0 0
  %468 = vmatprep.subr.bf16.mxu0 0
  %469 = vmatpush1.bf16.msra.mxu0 0
  %470 = vmatprep.subr.bf16.mxu0 0
  %471 = vmatpush1.bf16.msra.mxu0 0
  %472 = vmatprep.subr.bf16.mxu0 0
  %473 = vmatpush1.bf16.msra.mxu0 0
  %474 = vmatprep.subr.bf16.mxu0 0
  %475 = vmatpush1.bf16.msra.mxu0 0
  %476 = vmatprep.subr.bf16.mxu0 0
  %477 = vmatpush1.bf16.msra.mxu0 0
  %478 = vmatprep.mubr.bf16.mxu0 0
  %479 = vmatmul.mubr.bf16.gmra.mrb[0].mxu0 %v435
  %v480 = vpop.f32.mrb[0].mxu0
  %v481 = vadd.f32 %v377, %v480
  %v482 = vpop.f32.mrb[0].mxu0
  %v483 = vpop.f32.mrb[0].mxu0
  %v484 = vadd.f32 %v382, %v483
  %v485 = vpop.f32.mrb[0].mxu0
  %486 = vmatprep.mubr.bf16.mxu0 0
  %487 = vmatmul.mubr.bf16.gmra.mrb[0].mxu0 %v438
  %v488 = vpop.f32.mrb[0].mxu0
  %v489 = vadd.f32 %v387, %v488
  %v490 = vpop.f32.mrb[0].mxu0
  %v491 = vpop.f32.mrb[0].mxu0
  %v492 = vadd.f32 %v392, %v491
  %v493 = vpop.f32.mrb[0].mxu0
  %494 = vmatprep.mubr.bf16.mxu0 0
  %495 = vmatmul.mubr.bf16.gmra.mrb[0].mxu0 %v441
  %v496 = vpop.f32.mrb[0].mxu0
  %v497 = vadd.f32 %v397, %v496
  %v498 = vpop.f32.mrb[0].mxu0
  %v499 = vpop.f32.mrb[0].mxu0
  %v500 = vadd.f32 %v402, %v499
  %v501 = vpop.f32.mrb[0].mxu0
  %502 = vmatprep.mubr.bf16.mxu0 0
  %503 = vmatmul.mubr.bf16.gmra.mrb[0].mxu0 %v444
  %v504 = vpop.f32.mrb[0].mxu0
  %v505 = vadd.f32 %v407, %v504
  %v506 = vpop.f32.mrb[0].mxu0
  %v507 = vpop.f32.mrb[0].mxu0
  %v508 = vadd.f32 %v412, %v507
  %v509 = vpop.f32.mrb[0].mxu0
  %510 = vdwg.mxu0
  %v511 = vmax.f32 %v481, 0.0
  %v512 = vmax.f32 %v484, 0.0
  %v513 = vmax.f32 %v489, 0.0
  %v514 = vmax.f32 %v492, 0.0
  %v515 = vmax.f32 %v497, 0.0
  %v516 = vmax.f32 %v500, 0.0
  %v517 = vmax.f32 %v505, 0.0
  %v518 = vmax.f32 %v508, 0.0
  %v519 = vpack.c.bf16 %v512, %v511
  %v520 = vpack.c.bf16 %v514, %v513
  %v521 = vpack.c.bf16 %v516, %v515
  %v522 = vpack.c.bf16 %v518, %v517
  %s523 = scalar_lea.vmem %s1, 96
  %v524 = vld [vmem:[%s523] sm:$0xf]
  %v525 = vld [vmem:[%s523 + $0x4] sm:$0xf]
  %v526 = vld [vmem:[%s523 + $0x8] sm:$0xf]
  %v527 = vld [vmem:[%s523 + $0xc] sm:$0xf]
  %v528 = vld [vmem:[%s523 + $0x10] sm:$0xf]
  %v529 = vld [vmem:[%s523 + $0x14] sm:$0xf]
  %v530 = vld [vmem:[%s523 + $0x18] sm:$0xf]
  %v531 = vld [vmem:[%s523 + $0x1c] sm:$0xf]
  %s532 = scalar_lea.vmem %s2, 192
  %v533 = vld [vmem:[%s532] sm:$0xff]
  %v534 = vld [vmem:[%s532 + $0x8] sm:$0xff]
  %v535 = vld [vmem:[%s532 + $0x10] sm:$0xff]
  %v536 = vld [vmem:[%s532 + $0x18] sm:$0xff]
  %v537 = vld [vmem:[%s532 + $0x20] sm:$0xff]
  %v538 = vld [vmem:[%s532 + $0x28] sm:$0xff]
  %v539 = vld [vmem:[%s532 + $0x30] sm:$0xff]
  %v540 = vld [vmem:[%s532 + $0x38] sm:$0xff]
  %542 = vset.pattern.permute.xlu0 0
  %543 = vperm.xlu0 %542, %v533
  %v544 = vpop.permute.xlu0 %543
  %547 = vset.pattern.permute.xlu0 0
  %548 = vperm.xlu0 %547, %v534
  %v549 = vpop.permute.xlu0 %548
  %551 = vset.pattern.permute.xlu0 0
  %552 = vperm.xlu0 %551, %v535
  %v553 = vpop.permute.xlu0 %552
  %555 = vset.pattern.permute.xlu0 0
  %556 = vperm.xlu0 %555, %v536
  %v557 = vpop.permute.xlu0 %556
  %559 = vset.pattern.permute.xlu0 0
  %560 = vperm.xlu0 %559, %v537
  %v561 = vpop.permute.xlu0 %560
  %563 = vset.pattern.permute.xlu0 0
  %564 = vperm.xlu0 %563, %v538
  %v565 = vpop.permute.xlu0 %564
  %567 = vset.pattern.permute.xlu0 0
  %568 = vperm.xlu0 %567, %v539
  %v569 = vpop.permute.xlu0 %568
  %571 = vset.pattern.permute.xlu0 0
  %572 = vperm.xlu0 %571, %v540
  %v573 = vpop.permute.xlu0 %572
  %v582 = vunpack.c.l.b16 %v524
  %v583 = vunpack.c.l.b16 %v525
  %v584 = vunpack.c.l.b16 %v526
  %v585 = vunpack.c.l.b16 %v527
  %v586 = vunpack.c.l.b16 %v528
  %v587 = vunpack.c.l.b16 %v529
  %v588 = vunpack.c.l.b16 %v530
  %v589 = vunpack.c.l.b16 %v531
  %v590 = vpack.c.b16 %v583, %v582
  %v591 = vpack.c.b16 %v585, %v584
  %v592 = vpack.c.b16 %v587, %v586
  %v593 = vpack.c.b16 %v589, %v588
  %v595 = vsel %vm266, %v590, 0
  %v598 = vsel %vm266, %v591, 0
  %v601 = vsel %vm266, %v592, 0
  %v604 = vsel %vm266, %v593, 0
  %606 = vmatprep.subr.bf16.mxu0 0
  %607 = vmatpush1.bf16.msra.mxu0 %v519
  %608 = vmatprep.subr.bf16.mxu0 0
  %609 = vmatpush1.bf16.msra.mxu0 %v520
  %610 = vmatprep.subr.bf16.mxu0 0
  %611 = vmatpush1.bf16.msra.mxu0 %v521
  %612 = vmatprep.subr.bf16.mxu0 0
  %613 = vmatpush1.bf16.msra.mxu0 %v522
  %614 = vmatprep.subr.bf16.mxu0 0
  %615 = vmatpush1.bf16.msra.mxu0 0
  %616 = vmatprep.subr.bf16.mxu0 0
  %617 = vmatpush1.bf16.msra.mxu0 0
  %618 = vmatprep.subr.bf16.mxu0 0
  %619 = vmatpush1.bf16.msra.mxu0 0
  %620 = vmatprep.subr.bf16.mxu0 0
  %621 = vmatpush1.bf16.msra.mxu0 0
  %622 = vmatprep.subr.bf16.mxu0 0
  %623 = vmatpush1.bf16.msra.mxu0 0
  %624 = vmatprep.subr.bf16.mxu0 0
  %625 = vmatpush1.bf16.msra.mxu0 0
  %626 = vmatprep.subr.bf16.mxu0 0
  %627 = vmatpush1.bf16.msra.mxu0 0
  %628 = vmatprep.subr.bf16.mxu0 0
  %629 = vmatpush1.bf16.msra.mxu0 0
  %630 = vmatprep.subr.bf16.mxu0 0
  %631 = vmatpush1.bf16.msra.mxu0 0
  %632 = vmatprep.subr.bf16.mxu0 0
  %633 = vmatpush1.bf16.msra.mxu0 0
  %634 = vmatprep.subr.bf16.mxu0 0
  %635 = vmatpush1.bf16.msra.mxu0 0
  %636 = vmatprep.subr.bf16.mxu0 0
  %637 = vmatpush1.bf16.msra.mxu0 0
  %638 = vmatprep.mubr.bf16.mxu0 0
  %639 = vmatmul.mubr.bf16.gmra.mrb[0].mxu0 %v595
  %v640 = vpop.f32.mrb[0].mxu0
  %v641 = vadd.f32 %v544, %v640
  %v642 = vpop.f32.mrb[0].mxu0
  %v643 = vpop.f32.mrb[0].mxu0
  %v644 = vpop.f32.mrb[0].mxu0
  %645 = vmatprep.mubr.bf16.mxu0 0
  %646 = vmatmul.mubr.bf16.gmra.mrb[0].mxu0 %v598
  %v647 = vpop.f32.mrb[0].mxu0
  %v648 = vpop.f32.mrb[0].mxu0
  %v649 = vpop.f32.mrb[0].mxu0
  %v650 = vpop.f32.mrb[0].mxu0
  %651 = vmatprep.mubr.bf16.mxu0 0
  %652 = vmatmul.mubr.bf16.gmra.mrb[0].mxu0 %v601
  %v653 = vpop.f32.mrb[0].mxu0
  %v654 = vpop.f32.mrb[0].mxu0
  %v655 = vpop.f32.mrb[0].mxu0
  %v656 = vpop.f32.mrb[0].mxu0
  %657 = vmatprep.mubr.bf16.mxu0 0
  %658 = vmatmul.mubr.bf16.gmra.mrb[0].mxu0 %v604
  %v659 = vpop.f32.mrb[0].mxu0
  %v660 = vpop.f32.mrb[0].mxu0
  %v661 = vpop.f32.mrb[0].mxu0
  %v662 = vpop.f32.mrb[0].mxu0
  %663 = vdwg.mxu0
  %v664 = vmax.f32 %v641, 0.0
  %vm665 = vcmask 61440
  %666 = vst.msk [vmem:[%s3] sm:$0x1f] %vm665, %v664
  // Predicated region
  $region14: #{feed_forward_nn.1} parent=0 // pred_check
    _
  $region15: #{feed_forward_nn.1} parent=0 // pred_check_branch
    %668 = sbr.rel (0) target = $region17
  $region16: #{feed_forward_nn.1} parent=0 // pred_region
    _
  $region17: #{feed_forward_nn.1} parent=0 // pred_fallthru
    _
  // Predicated region
  $region18: #{feed_forward_nn.1} parent=0 // pred_check
    _
  $region19: #{feed_forward_nn.1} parent=0 // pred_check_branch
    %670 = sbr.rel (0) target = $region21
  $region20: #{feed_forward_nn.1} parent=0 // pred_region
    _
  $region21: #{feed_forward_nn.1} parent=0 // pred_fallthru
    _

</llo_original>
